<compile_context>
chip_gen: v6e
topology: v6e:2x2x1
jax: 0.10.0
libtpu: 0.0.40
codegen_flags: <defaults>
</compile_context>

<pallas_src>
import functools

import jax
import jax.numpy as jnp
from jax import lax
from jax.experimental import pallas as pl
from jax.experimental.pallas import tpu as pltpu


_VAR_REL_EPS = 1e-6      # relative gate for "degenerate" (zero-variance) rows
_FLAT_OUT_OK = {}        # config -> bool; did the lane-dense output layout lower?


# --------------------------------------------------------------------------- #
# Kernel helpers
# --------------------------------------------------------------------------- #
def _eye(C, value):
    row = lax.broadcasted_iota(jnp.int32, (C, C), 0)
    col = lax.broadcasted_iota(jnp.int32, (C, C), 1)
    return jnp.where(row == col, jnp.float32(value), jnp.float32(0.0))


def _gram_nt(x):
    # x: (NB, C, T) raw dtype -> (NB, C, C) f32.  NT-form: contracts the time
    # dim of both operands directly on the MXU (no transpose / relayout).
    return lax.dot_general(
        x, x, dimension_numbers=(((2,), (2,)), ((0,), (0,))),
        preferred_element_type=jnp.float32)


def _outer(a, b):
    # a, b: (NB, C, 1) f32 -> (NB, C, C) f32, contracting the size-1 dim.
    return lax.dot_general(
        a, b, dimension_numbers=(((2,), (2,)), ((0,), (0,))),
        preferred_element_type=jnp.float32)


def _finalize(sxx, sx, sx2, total_t, alpha, unitvar):
    """Moments -> covariance.  All inputs f32; returns (NB, C, C) f32."""
    C = sxx.shape[1]
    inv_t = jnp.float32(1.0 / total_t)
    mean = sx * inv_t                                           # (NB, C, 1)
    gram = sxx - jnp.float32(total_t) * _outer(mean, mean)      # (X-m)(X-m)^T
    cov = gram * inv_t
    if unitvar:
        # Unbiased variance from moments.  Relative-epsilon gate so moment
        # cancellation cannot un-zero a constant channel; total_t == 1 -> var 0.
        inv_tm1 = (jnp.float32(1.0 / (total_t - 1)) if total_t > 1
                   else jnp.float32(0.0))
        var = (sx2 - jnp.float32(total_t) * mean * mean) * inv_tm1
        mean_sq = sx2 * inv_t
        ok = var > jnp.float32(_VAR_REL_EPS) * mean_sq
        inv_std = jnp.where(
            ok, lax.rsqrt(jnp.maximum(var, jnp.float32(1e-30))), jnp.float32(0.0))
        cov = cov * _outer(inv_std, inv_std)
    if alpha is not None:
        cov = cov + _eye(C, alpha)[None]
    return cov


def _store(o_ref, cov, flat_out):
    if flat_out:
        # Lane-dense writeback: one (1, NB*C*C) slab -> dense stores and a
        # single contiguous HBM run instead of C-lane masked rows.
        cov = cov.reshape(1, -1)
    o_ref[...] = cov.astype(o_ref.dtype)


# --------------------------------------------------------------------------- #
# Kernels
# --------------------------------------------------------------------------- #
def _cov_direct_kernel(x_ref, o_ref, *, alpha, unitvar, flat_out):
    # One shot per batch block: x_ref is (NB, C, T) in its raw dtype.
    x = x_ref[...]
    T = x.shape[-1]
    sxx = _gram_nt(x)
    sx = jnp.sum(x, axis=-1, keepdims=True, dtype=jnp.float32)
    sx2 = (jnp.sum(x * x, axis=-1, keepdims=True, dtype=jnp.float32)
           if unitvar else None)
    _store(o_ref, _finalize(sxx, sx, sx2, T, alpha, unitvar), flat_out)


def _cov_acc_kernel(x_ref, o_ref, sxx_ref, sx_ref, sx2_ref, *,
                    alpha, unitvar, total_t, flat_out):
    # T-tiled path: x_ref is (NB, C, tT); running moments live in f32 scratch.
    t = pl.program_id(1)

    @pl.when(t == 0)
    def _():
        sxx_ref[...] = jnp.zeros_like(sxx_ref)
        sx_ref[...] = jnp.zeros_like(sx_ref)
        if unitvar:
            sx2_ref[...] = jnp.zeros_like(sx2_ref)

    x = x_ref[...]
    sx_ref[...] += jnp.sum(x, axis=-1, keepdims=True, dtype=jnp.float32)
    if unitvar:
        sx2_ref[...] += jnp.sum(x * x, axis=-1, keepdims=True, dtype=jnp.float32)
    sxx_ref[...] += _gram_nt(x)

    @pl.when(t == pl.num_programs(1) - 1)
    def _():
        cov = _finalize(sxx_ref[...], sx_ref[...],
                        sx2_ref[...] if unitvar else None,
                        total_t, alpha, unitvar)
        _store(o_ref, cov, flat_out)


# --------------------------------------------------------------------------- #
# Wrapper / tiling policy
# --------------------------------------------------------------------------- #
def _chip_config():
    """Per-chip (max_block_bytes, vmem_limit_bytes, min_grid_blocks)."""
    try:
        vmem = int(pltpu.get_tpu_info().vmem_capacity_bytes)
    except Exception:
        vmem = 64 * 1024 * 1024                  # unknown -> assume small-VMEM part
    if vmem >= 100 * 1024 * 1024:
        # v5e / v6e: 128 MiB VMEM, one TensorCore -> few, big blocks.
        return 16 * 1024 * 1024, 96 * 1024 * 1024, 1
    # v7x-class: 64 MiB VMEM, two TensorCores -> smaller blocks, keep grid >= 2
    # so the parallel batch axis feeds both cores.
    return 8 * 1024 * 1024, 48 * 1024 * 1024, 2


def _pick_nb(B, samples_cap, min_grid):
    """Largest divisor of B within the block budget; honors the min grid size."""
    cap = max(1, int(samples_cap))
    if min_grid > 1 and B >= min_grid:
        cap = min(cap, B // min_grid)
    cap = min(cap, B)
    divisors = [d for d in range(1, cap + 1) if B % d == 0]
    if not divisors:
        return 1
    if min_grid > 1:
        even = [d for d in divisors if (B // d) % 2 == 0]
        if even:                                  # even grid -> no idle tail core
            return max(even)
    return max(divisors)


def _is_tracer(x):
    tracer_cls = getattr(jax.core, "Tracer", None)
    return True if tracer_cls is None else isinstance(x, tracer_cls)


def _call(x_in, *, B, C, nb, tb, t_total, grid, use_acc, flat_out, alpha,
          unitvar, vmem_limit, out_dtype):
    if flat_out:
        out_shape = jax.ShapeDtypeStruct((B // nb, nb * C * C), out_dtype)
        out_block = (1, nb * C * C)
        out_idx = (lambda b, t: (b, 0)) if use_acc else (lambda b: (b, 0))
    else:
        out_shape = jax.ShapeDtypeStruct((B, C, C), out_dtype)
        out_block = (nb, C, C)
        out_idx = (lambda b, t: (b, 0, 0)) if use_acc else (lambda b: (b, 0, 0))
    out_specs = pl.BlockSpec(out_block, out_idx)

    if use_acc:
        kernel = functools.partial(_cov_acc_kernel, alpha=alpha, unitvar=unitvar,
                                   total_t=t_total, flat_out=flat_out)
        in_specs = [pl.BlockSpec((nb, C, tb), lambda b, t: (b, 0, t))]
        scratch = [pltpu.VMEM((nb, C, C), jnp.float32),
                   pltpu.VMEM((nb, C, 1), jnp.float32),
                   pltpu.VMEM((nb, C, 1), jnp.float32)]
        dim_sem = ("parallel", "arbitrary")
    else:
        kernel = functools.partial(_cov_direct_kernel, alpha=alpha,
                                   unitvar=unitvar, flat_out=flat_out)
        in_specs = [pl.BlockSpec((nb, C, tb), lambda b: (b, 0, 0))]
        scratch = []
        dim_sem = ("parallel",)

    fn = pl.pallas_call(
        kernel,
        out_shape=out_shape,
        grid_spec=pltpu.PrefetchScalarGridSpec(
            num_scalar_prefetch=0,
            grid=grid,
            in_specs=in_specs,
            out_specs=out_specs,
            scratch_shapes=scratch,
        ),
        compiler_params=pltpu.CompilerParams(
            dimension_semantics=dim_sem,
            vmem_limit_bytes=vmem_limit,
        ),
    )
    return fn(x_in)


def covariance_pool(x, alpha=None, unitvar=False, *,
                    max_block_bytes=None, t_block=None, lane_dense_out=None):
    """x: (B, C, T) -> (B, C, C).  Matches CovariancePool.forward semantics."""
    B, C, T = x.shape
    budget, vmem_limit, min_grid = _chip_config()
    if max_block_bytes is None:
        max_block_bytes = budget
    itemsize = jnp.dtype(x.dtype).itemsize
    per_sample_bytes = C * T * itemsize

    use_acc = (per_sample_bytes > max_block_bytes
               or (t_block is not None and t_block < T))

    if not use_acc:
        nb = _pick_nb(B, max_block_bytes // max(per_sample_bytes, 1), min_grid)
        x_in, tb = x, T
        grid = (B // nb,)
    else:
        # Budget goes to the time tile first (longest contiguous HBM runs per
        # DMA), then to the batch tile.
        min_t = 128 if itemsize >= 4 else 256
        if t_block is None:
            t_block = (max_block_bytes // (C * itemsize)) // 128 * 128
        tb = max(min_t, ((int(t_block) + 127) // 128) * 128)
        t_pad = ((T + tb - 1) // tb) * tb
        # Zero padding is exact: padded columns add nothing to S_x / S_xx / S_x2
        # and the finalize uses the true T.
        x_in = x if t_pad == T else jnp.pad(x, ((0, 0), (0, 0), (0, t_pad - T)))
        nb = _pick_nb(B, max_block_bytes // max(C * tb * itemsize, 1), min_grid)
        grid = (B // nb, t_pad // tb)

    # Lane-dense flat output unless C is already a multiple of 128.  Auto mode
    # only tries it on concrete arrays so a failed Mosaic lowering of the
    # in-kernel reshape can be caught and retried with the natural layout.
    if lane_dense_out is None:
        lane_dense_out = (C % 128 != 0) and not _is_tracer(x)

    cfg = (B, C, T, str(jnp.dtype(x.dtype)), bool(unitvar), alpha is not None,
           use_acc, nb, tb)

    def run(flat):
        return _call(x_in, B=B, C=C, nb=nb, tb=tb, t_total=T, grid=grid,
                     use_acc=use_acc, flat_out=flat, alpha=alpha,
                     unitvar=unitvar, vmem_limit=vmem_limit, out_dtype=x.dtype)

    if lane_dense_out and _FLAT_OUT_OK.get(cfg, True):
        try:
            out = run(True)
            if not _is_tracer(out):
                out = jax.block_until_ready(out)
            _FLAT_OUT_OK[cfg] = True
            return out.reshape(B, C, C)
        except Exception:
            # The lane-dense reshape did not lower / run on this Mosaic version;
            # fall back to the natural (nb, C, C) output layout.
            _FLAT_OUT_OK[cfg] = False
    return run(False)


# --------------------------------------------------------------------------- #
# Reference + self-test
# --------------------------------------------------------------------------- #
def _reference(x, alpha=None, unitvar=False):
    x = x.astype(jnp.float32)
    x0 = x - jnp.mean(x, axis=-1, keepdims=True)
    if unitvar:
        std = jnp.std(x0, axis=-1, keepdims=True, ddof=1)
        x0 = jnp.nan_to_num(x0 / std, nan=0.0, posinf=0.0, neginf=0.0)
    T = x.shape[-1]
    cov = jnp.einsum("bct,bdt->bcd", x0, x0) / T
    if alpha is not None:
        cov = cov + alpha * jnp.eye(x.shape[-2], dtype=cov.dtype)[None]
    return cov


if __name__ == "__main__":
    key = jax.random.PRNGKey(0)

    # Case 1: default config (alpha=None, unitvar=False); direct full-T path.
    B, C, T = 8, 8, 128
    x1 = jax.random.normal(key, (B, C, T), dtype=jnp.float32)
    out1 = jax.block_until_ready(covariance_pool(x1))
    ref1 = _reference(x1)
    assert out1.shape == (B, C, C)
    assert jnp.allclose(out1, ref1, atol=1e-4, rtol=1e-4), "case1 mismatch"

    # Case 2: unitvar + alpha, with one constant channel (degenerate row -> 0).
    x2 = x1.at[:, 3, :].set(2.5)
    out2 = jax.block_until_ready(covariance_pool(x2, alpha=0.1, unitvar=True))
    ref2 = _reference(x2, alpha=0.1, unitvar=True)
    assert jnp.allclose(out2, ref2, atol=1e-4, rtol=1e-4), "case2 mismatch"

    # Case 3: T-tiled accumulation path (forced t_block < T) with T padding
    # (320 is not a multiple of 128 -> padded to 384, results stay exact).
    x3 = jax.random.normal(jax.random.fold_in(key, 1), (4, 8, 320),
                           dtype=jnp.float32)
    out3 = jax.block_until_ready(
        covariance_pool(x3, alpha=0.05, unitvar=True, t_block=128))
    ref3 = _reference(x3, alpha=0.05, unitvar=True)
    assert jnp.allclose(out3, ref3, atol=1e-4, rtol=1e-4), "case3 mismatch"

    print("KERNEL_OK")
</pallas_src>

<mosaic_0001>
module attributes {stable_mosaic.version = 11 : i64} {
  func.func @_cov_direct_kernel(%arg0: i32, %arg1: memref<4x8x128xf32, #tpu.memory_space<vmem>>, %arg2: memref<4x8x8xf32, #tpu.memory_space<vmem>>) attributes {dimension_semantics = [#tpu.dimension_semantics<parallel>], iteration_bounds = array<i64: 2>, scalar_prefetch = 0 : i64, scratch_operands = 0 : i64, tpu.core_type = #tpu.core_type<tc>, window_params = [{transform_indices = @transform_0, window_bounds = array<i64: 4, 8, 128>}, {transform_indices = @transform_1, window_bounds = array<i64: 4, 8, 8>}]} {
    %c0 = arith.constant 0 : index
    %c0_0 = arith.constant 0 : index
    %c0_1 = arith.constant 0 : index
    %0 = vector.load %arg1[%c0, %c0_0, %c0_1] : memref<4x8x128xf32, #tpu.memory_space<vmem>>, vector<4x8x128xf32>
    %cst = arith.constant dense<0.000000e+00> : vector<4x8x8xf32>
    %1 = tpu.matmul %0, %0, %cst {dimension_numbers = #tpu.dot_dimension_numbers<[2], [2], [1], [1], [0, 0, 0, 1, 1, 1], [0], [0]>} : vector<4x8x128xf32>, vector<4x8x128xf32>, vector<4x8x8xf32> -> vector<4x8x8xf32>
    %cst_2 = arith.constant dense<0.000000e+00> : vector<4x8xf32>
    %2 = vector.multi_reduction <add>, %0, %cst_2 [2] : vector<4x8x128xf32> to vector<4x8xf32>
    %3 = vector.shape_cast %2 : vector<4x8xf32> to vector<4x8x1xf32>
    %cst_3 = arith.constant 7.812500e-03 : f32
    %4 = vector.broadcast %cst_3 : f32 to vector<4x8x1xf32>
    %5 = arith.mulf %3, %4 : vector<4x8x1xf32>
    %cst_4 = arith.constant dense<0.000000e+00> : vector<4x8x8xf32>
    %6 = tpu.matmul %5, %5, %cst_4 {dimension_numbers = #tpu.dot_dimension_numbers<[2], [2], [1], [1], [0, 0, 0, 1, 1, 1], [0], [0]>} : vector<4x8x1xf32>, vector<4x8x1xf32>, vector<4x8x8xf32> -> vector<4x8x8xf32>
    %cst_5 = arith.constant 1.280000e+02 : f32
    %7 = vector.broadcast %cst_5 : f32 to vector<4x8x8xf32>
    %8 = arith.mulf %7, %6 : vector<4x8x8xf32>
    %9 = arith.subf %1, %8 : vector<4x8x8xf32>
    %cst_6 = arith.constant 7.812500e-03 : f32
    %10 = vector.broadcast %cst_6 : f32 to vector<4x8x8xf32>
    %11 = arith.mulf %9, %10 : vector<4x8x8xf32>
    %c0_7 = arith.constant 0 : index
    %c0_8 = arith.constant 0 : index
    %c0_9 = arith.constant 0 : index
    %12 = vector.load %arg2[%c0_7, %c0_8, %c0_9] : memref<4x8x8xf32, #tpu.memory_space<vmem>>, vector<4x8x8xf32>
    tpu.vector_store %arg2[%c0_7, %c0_8, %c0_9], %11 {strides = array<i32>} : memref<4x8x8xf32, #tpu.memory_space<vmem>>, vector<4x8x8xf32>,
    return
  }
  func.func @transform_0(%arg0: i32) -> (i32, i32, i32) {
    %c0_i32 = arith.constant 0 : i32
    %c0_i32_0 = arith.constant 0 : i32
    %c0_i32_1 = arith.constant 0 : i32
    return %arg0, %c0_i32, %c0_i32_0 : i32, i32, i32
  }
  func.func @transform_1(%arg0: i32) -> (i32, i32, i32) {
    %c0_i32 = arith.constant 0 : i32
    %c0_i32_0 = arith.constant 0 : i32
    %c0_i32_1 = arith.constant 0 : i32
    return %arg0, %c0_i32, %c0_i32_0 : i32, i32, i32
  }
}

</mosaic_0001>

<llo_original>
// kernel: tpu_custom_call.1
$region0: #{tpu_custom_call.1}
  #allocation0 [shape = 'u32[]', space=smem, size = 0x4, offset = 0x4, fixed_abs, tag = 'smem constant byte address 0x4 - core index']
  #allocation1 [shape = 'u32[144,128]{1,0:T(1,128)}', space=vmem, size = 0x12000, scoped, tag = 'internal scratch']
  %s0 = inlined_call_operand.hbm [shape: f32[8,8,128], index: 0, kind: input, shape index: {}]
  %s1 = inlined_call_operand.hbm [shape: f32[8,8,8], index: 1, kind: output, shape index: {}]
  %s2 = sld [smem:[#allocation0]]
  $region41: #{tpu_custom_call.1} parent=0
    _
  %s4 = ssub.s32 1, %s2
  %s5 = scalar_select 0, %s4, %s2
  $region1: #{tpu_custom_call.1} parent=0
    #allocation2 [shape = 'u8[32768]{0}', space=vmem, size = 0x8000, scoped, tag = 'input window, operand 0']
    #allocation3 [shape = 's32[2]{0}', space=sflag, size = 0x8, scoped, tag = 'scoped memory for tpu_custom_call.1']
    #allocation4 [shape = 's32[2]{0}', space=sflag, size = 0x8, scoped, tag = 'scoped memory for tpu_custom_call.1']
    #allocation5 [shape = 'u8[32768]{0}', space=vmem, size = 0x8000, scoped, tag = 'output window, operand 0']
    %6 = vsyncpa [#allocation3], 0
    %s7 = scalar_lea.sflag [#allocation3], 1
    %8 = vsyncpa %s7, 0
    %9 = vsyncpa [#allocation4], 0
    %s10 = scalar_lea.sflag [#allocation4], 1
    %11 = vsyncpa %s10, 0
    loop: start=0, step=1, limit=4
    $region2: #{tpu_custom_call.1} parent=1 // loop_pre_header
      _
    $region3: #{tpu_custom_call.1} parent=1 // loop_header
      %s13 = sphi 0, %s17
      %p14 = scmp.ge.s32.totalorder %s13, 4
      %s23 = sphi 0, %s25
      %s26 = sphi 0, %s23
      %s27 = sphi 0, %s26
      %s43 = sphi 0, %s27
      %s49 = sphi 0, %s51
      %s52 = sphi 0, %s49
      %s53 = sphi 0, %s52
      %s69 = sphi 0, %s53
    $region4: #{tpu_custom_call.1} parent=1 // loop_header_branch
      %16 = sbr.rel (%p14) target = $region8
    $region5: #{tpu_custom_call.1} parent=1 // loop_body
      %s18 = ssub.s32 %s13, 1
      %s19 = ssub.s32 %s13, 2
      %s20 = sadd.s32 %s13, 1
      %s21 = ssub.s32 %s13, %s20
      %p22 = scmp.eq.s32.totalorder %s21, 0
      %s24 = sadd.s32 %s23, 1
      %s25 = scalar_select %p22, %s23, %s24
      %p28 = pneg %p22
      %p29 = scmp.eq.s32.totalorder %s13, 1
      %p30 = por %p28, %p29
      %p31 = scmp.ne.s32.totalorder %s23, %s26
      %p32 = scmp.eq.s32.totalorder %s13, 0
      %p33 = por %p31, %p32
      %p34 = scmp.ne.s32.totalorder %s23, %s26
      %p35 = scmp.eq.s32.totalorder %s18, 1
      %p36 = por %p34, %p35
      %p37 = scmp.ne.s32.totalorder %s26, %s27
      %p38 = scmp.eq.s32.totalorder %s18, 0
      %p39 = por %p37, %p38
      %p40 = scmp.ne.s32.totalorder %s26, %s27
      %p41 = scmp.eq.s32.totalorder %s19, 1
      %p42 = por %p40, %p41
      %p44 = scmp.ne.s32.totalorder %s27, %s43
      %p45 = scmp.eq.s32.totalorder %s19, 0
      %p46 = por %p44, %p45
      %s47 = ssub.s32 %s13, %s20
      %p48 = scmp.eq.s32.totalorder %s47, 0
      %s50 = sadd.s32 %s49, 1
      %s51 = scalar_select %p48, %s49, %s50
      %p54 = pneg %p48
      %p55 = scmp.eq.s32.totalorder %s13, 1
      %p56 = por %p54, %p55
      %p57 = scmp.ne.s32.totalorder %s49, %s52
      %p58 = scmp.eq.s32.totalorder %s13, 0
      %p59 = por %p57, %p58
      %p60 = scmp.ne.s32.totalorder %s49, %s52
      %p61 = scmp.eq.s32.totalorder %s18, 1
      %p62 = por %p60, %p61
      %p63 = scmp.ne.s32.totalorder %s52, %s53
      %p64 = scmp.eq.s32.totalorder %s18, 0
      %p65 = por %p63, %p64
      %p66 = scmp.ne.s32.totalorder %s52, %s53
      %p67 = scmp.eq.s32.totalorder %s19, 1
      %p68 = por %p66, %p67
      %p70 = scmp.ne.s32.totalorder %s53, %s69
      %p71 = scmp.eq.s32.totalorder %s19, 0
      %p72 = por %p70, %p71
      %p73 = scmp.le.s32.totalorder 1, %s13
      %p74 = scmp.lt.s32.totalorder %s13, 3
      %p75 = pnand %p73, %p74
      %p76 = pneg %p75
      // Predicated region
      $region9: #{tpu_custom_call.1} parent=5 // pred_check
        _
      $region10: #{tpu_custom_call.1} parent=5 // pred_check_branch
        %78 = sbr.rel (%p75) target = $region12
      $region11: #{tpu_custom_call.1} parent=5 // pred_region
        %s79 = ssub.s32 %s13, 1
      $region12: #{tpu_custom_call.1} parent=5 // pred_fallthru
        _
      %p80 = scmp.lt.s32.totalorder %s13, 2
      // Predicated region
      $region13: #{tpu_custom_call.1} parent=5 // pred_check
        %p81 = pneg %p80
      $region14: #{tpu_custom_call.1} parent=5 // pred_check_branch
        %83 = sbr.rel (%p81) target = $region16
      $region15: #{tpu_custom_call.1} parent=5 // pred_region
        // Predicated region
        $region17: #{tpu_custom_call.1} parent=15 // pred_check
          %p84 = pneg %p33
        $region18: #{tpu_custom_call.1} parent=15 // pred_check_branch
          %86 = sbr.rel (%p84) target = $region20
        $region19: #{tpu_custom_call.1} parent=15 // pred_region
          %s87 = sand.u32 %s23, 1
          %s88 = scalar_lea.sflag [#allocation3], %s87
          %s89 = sand.u32 %s23, 1
          %s90 = smul.addr %s89, 32
          %s91 = scalar_lea.vmem [#allocation2], %s90
          %s92 = smul.u32 4, %s13
          %s94 = ssub.s32 512, 512
          %95 = vsyncadd %s88, %s94
          %s96 = smul.addr %s92, 128
          %s97 = scalar_lea.hbm %s0, %s96
          %s98 = sshll.u32 %s91, 4
          %s99 = int_to_ptr.vmem [resolvable:$true] %s98
          %104 = dma.hbm_to_vmem [thread:$0]  %s97, 512, %s99, %s88, 128, 128, 8
        $region20: #{tpu_custom_call.1} parent=15 // pred_fallthru
          _
      $region16: #{tpu_custom_call.1} parent=5 // pred_fallthru
        _
      %p105 = scmp.le.s32.totalorder 1, %s13
      %p106 = scmp.lt.s32.totalorder %s13, 3
      %p107 = pnand %p105, %p106
      %p108 = pneg %p107
      // Predicated region
      $region21: #{tpu_custom_call.1} parent=5 // pred_check
        _
      $region22: #{tpu_custom_call.1} parent=5 // pred_check_branch
        %110 = sbr.rel (%p107) target = $region24
      $region23: #{tpu_custom_call.1} parent=5 // pred_region
        %s111 = ssub.s32 %s13, 1
        %s112 = sand.u32 %s26, 1
        %s113 = scalar_lea.sflag [#allocation3], %s112
        %s114 = sand.u32 %s26, 1
        %s115 = smul.addr %s114, 32
        %s116 = scalar_lea.vmem [#allocation2], %s115
        // Predicated region
        $region25: #{tpu_custom_call.1} parent=23 // pred_check
          %p117 = pneg %p39
        $region26: #{tpu_custom_call.1} parent=23 // pred_check_branch
          %119 = sbr.rel (%p117) target = $region28
        $region27: #{tpu_custom_call.1} parent=23 // pred_region
          %120 = dma.done %s113, 512
        $region28: #{tpu_custom_call.1} parent=23 // pred_fallthru
          _
        %s121 = sand.u32 %s26, 1
        %s122 = scalar_lea.sflag [#allocation3], %s121
        %s123 = sand.u32 %s26, 1
        %s124 = smul.addr %s123, 32
        %s125 = scalar_lea.vmem [#allocation2], %s124
        %p126 = pneg %p39
        %p127 = pneg %p36
        %p128 = pneg %p65
        %p129 = pneg %p62
        %s130 = sand.u32 %s52, 1
        %s131 = scalar_lea.sflag [#allocation4], %s130
        %s132 = sand.u32 %s52, 1
        %s133 = smul.addr %s132, 32
        %s134 = scalar_lea.vmem [#allocation5], %s133
        %s135 = smul.u32 4, %s18
        %s136 = smul.u32 4, %s18
        %v137 = vld [vmem:[%s116] sm:$0xff]
        %v138 = vld [vmem:[%s116 + $0x8] sm:$0xff]
        %v139 = vld [vmem:[%s116 + $0x10] sm:$0xff]
        %v140 = vld [vmem:[%s116 + $0x18] sm:$0xff]
        %141 = vmatprep.subr.mxu0 0.0
        %142 = vmatpush1.xpose.msra.mxu0 0.0
        %143 = vmatprep.subr.mxu0 0.0
        %144 = vmatpush1.xpose.msra.mxu0 0.0
        %145 = vmatprep.subr.mxu0 0.0
        %146 = vmatpush1.xpose.msra.mxu0 0.0
        %147 = vmatprep.subr.mxu0 0.0
        %148 = vmatpush1.xpose.msra.mxu0 0.0
        %149 = vmatprep.subr.mxu0 0.0
        %150 = vmatpush1.xpose.msra.mxu0 0.0
        %151 = vmatprep.subr.mxu0 0.0
        %152 = vmatpush1.xpose.msra.mxu0 0.0
        %153 = vmatprep.subr.mxu0 0.0
        %154 = vmatpush1.xpose.msra.mxu0 0.0
        %155 = vmatprep.subr.mxu0 0.0
        %156 = vmatpush1.xpose.msra.mxu0 0.0
        %157 = vmatprep.subr.mxu0 0.0
        %158 = vmatpush1.xpose.msra.mxu0 0.0
        %159 = vmatprep.subr.mxu0 0.0
        %160 = vmatpush1.xpose.msra.mxu0 0.0
        %161 = vmatprep.subr.mxu0 0.0
        %162 = vmatpush1.xpose.msra.mxu0 0.0
        %163 = vmatprep.subr.mxu0 0.0
        %164 = vmatpush1.xpose.msra.mxu0 0.0
        %165 = vmatprep.subr.mxu0 0.0
        %166 = vmatpush1.xpose.msra.mxu0 0.0
        %167 = vmatprep.subr.mxu0 0.0
        %168 = vmatpush1.xpose.msra.mxu0 0.0
        %169 = vmatprep.subr.mxu0 0.0
        %170 = vmatpush1.xpose.msra.mxu0 0.0
        %171 = vmatprep.subr.mxu0 0.0
        %172 = vmatpush1.xpose.msra.mxu0 %v137
        %173 = vmatprep.subr.mxu0 0.0
        %174 = vmatpush2.xpose.msra.mxu0 0.0
        %175 = vmatprep.subr.mxu0 0.0
        %176 = vmatpush2.xpose.msra.mxu0 0.0
        %177 = vmatprep.subr.mxu0 0.0
        %178 = vmatpush2.xpose.msra.mxu0 0.0
        %179 = vmatprep.subr.mxu0 0.0
        %180 = vmatpush2.xpose.msra.mxu0 0.0
        %181 = vmatprep.subr.mxu0 0.0
        %182 = vmatpush2.xpose.msra.mxu0 0.0
        %183 = vmatprep.subr.mxu0 0.0
        %184 = vmatpush2.xpose.msra.mxu0 0.0
        %185 = vmatprep.subr.mxu0 0.0
        %186 = vmatpush2.xpose.msra.mxu0 0.0
        %187 = vmatprep.subr.mxu0 0.0
        %188 = vmatpush2.xpose.msra.mxu0 0.0
        %189 = vmatprep.subr.mxu0 0.0
        %190 = vmatpush2.xpose.msra.mxu0 0.0
        %191 = vmatprep.subr.mxu0 0.0
        %192 = vmatpush2.xpose.msra.mxu0 0.0
        %193 = vmatprep.subr.mxu0 0.0
        %194 = vmatpush2.xpose.msra.mxu0 0.0
        %195 = vmatprep.subr.mxu0 0.0
        %196 = vmatpush2.xpose.msra.mxu0 0.0
        %197 = vmatprep.subr.mxu0 0.0
        %198 = vmatpush2.xpose.msra.mxu0 0.0
        %199 = vmatprep.subr.mxu0 0.0
        %200 = vmatpush2.xpose.msra.mxu0 0.0
        %201 = vmatprep.subr.mxu0 0.0
        %202 = vmatpush2.xpose.msra.mxu0 0.0
        %203 = vmatprep.subr.mxu0 0.0
        %204 = vmatpush2.xpose.msra.mxu0 0.0
        %205 = vmatprep.mubr.f32.mxu0 0.0
        %206 = vmatmul.mubr.f32.gmra.mxu0 %v137
        %v207 = vpop.f32.mrf.mxu0
        %v208 = vadd.f32 0.0, %v207
        %v209 = vpop.f32.mrf.mxu0
        %210 = vdwg.mxu0
        %211 = vmatprep.subr.mxu0 0.0
        %212 = vmatpush1.xpose.msra.mxu0 0.0
        %213 = vmatprep.subr.mxu0 0.0
        %214 = vmatpush1.xpose.msra.mxu0 0.0
        %215 = vmatprep.subr.mxu0 0.0
        %216 = vmatpush1.xpose.msra.mxu0 0.0
        %217 = vmatprep.subr.mxu0 0.0
        %218 = vmatpush1.xpose.msra.mxu0 0.0
        %219 = vmatprep.subr.mxu0 0.0
        %220 = vmatpush1.xpose.msra.mxu0 0.0
        %221 = vmatprep.subr.mxu0 0.0
        %222 = vmatpush1.xpose.msra.mxu0 0.0
        %223 = vmatprep.subr.mxu0 0.0
        %224 = vmatpush1.xpose.msra.mxu0 0.0
        %225 = vmatprep.subr.mxu0 0.0
        %226 = vmatpush1.xpose.msra.mxu0 0.0
        %227 = vmatprep.subr.mxu0 0.0
        %228 = vmatpush1.xpose.msra.mxu0 0.0
        %229 = vmatprep.subr.mxu0 0.0
        %230 = vmatpush1.xpose.msra.mxu0 0.0
        %231 = vmatprep.subr.mxu0 0.0
        %232 = vmatpush1.xpose.msra.mxu0 0.0
        %233 = vmatprep.subr.mxu0 0.0
        %234 = vmatpush1.xpose.msra.mxu0 0.0
        %235 = vmatprep.subr.mxu0 0.0
        %236 = vmatpush1.xpose.msra.mxu0 0.0
        %237 = vmatprep.subr.mxu0 0.0
        %238 = vmatpush1.xpose.msra.mxu0 0.0
        %239 = vmatprep.subr.mxu0 0.0
        %240 = vmatpush1.xpose.msra.mxu0 0.0
        %241 = vmatprep.subr.mxu0 0.0
        %242 = vmatpush1.xpose.msra.mxu0 %v138
        %243 = vmatprep.subr.mxu0 0.0
        %244 = vmatpush2.xpose.msra.mxu0 0.0
        %245 = vmatprep.subr.mxu0 0.0
        %246 = vmatpush2.xpose.msra.mxu0 0.0
        %247 = vmatprep.subr.mxu0 0.0
        %248 = vmatpush2.xpose.msra.mxu0 0.0
        %249 = vmatprep.subr.mxu0 0.0
        %250 = vmatpush2.xpose.msra.mxu0 0.0
        %251 = vmatprep.subr.mxu0 0.0
        %252 = vmatpush2.xpose.msra.mxu0 0.0
        %253 = vmatprep.subr.mxu0 0.0
        %254 = vmatpush2.xpose.msra.mxu0 0.0
        %255 = vmatprep.subr.mxu0 0.0
        %256 = vmatpush2.xpose.msra.mxu0 0.0
        %257 = vmatprep.subr.mxu0 0.0
        %258 = vmatpush2.xpose.msra.mxu0 0.0
        %259 = vmatprep.subr.mxu0 0.0
        %260 = vmatpush2.xpose.msra.mxu0 0.0
        %261 = vmatprep.subr.mxu0 0.0
        %262 = vmatpush2.xpose.msra.mxu0 0.0
        %263 = vmatprep.subr.mxu0 0.0
        %264 = vmatpush2.xpose.msra.mxu0 0.0
        %265 = vmatprep.subr.mxu0 0.0
        %266 = vmatpush2.xpose.msra.mxu0 0.0
        %267 = vmatprep.subr.mxu0 0.0
        %268 = vmatpush2.xpose.msra.mxu0 0.0
        %269 = vmatprep.subr.mxu0 0.0
        %270 = vmatpush2.xpose.msra.mxu0 0.0
        %271 = vmatprep.subr.mxu0 0.0
        %272 = vmatpush2.xpose.msra.mxu0 0.0
        %273 = vmatprep.subr.mxu0 0.0
        %274 = vmatpush2.xpose.msra.mxu0 0.0
        %275 = vmatprep.mubr.f32.mxu0 0.0
        %276 = vmatmul.mubr.f32.gmra.mxu0 %v138
        %v277 = vpop.f32.mrf.mxu0
        %v278 = vadd.f32 0.0, %v277
        %v279 = vpop.f32.mrf.mxu0
        %280 = vdwg.mxu0
        %281 = vmatprep.subr.mxu0 0.0
        %282 = vmatpush1.xpose.msra.mxu0 0.0
        %283 = vmatprep.subr.mxu0 0.0
        %284 = vmatpush1.xpose.msra.mxu0 0.0
        %285 = vmatprep.subr.mxu0 0.0
        %286 = vmatpush1.xpose.msra.mxu0 0.0
        %287 = vmatprep.subr.mxu0 0.0
        %288 = vmatpush1.xpose.msra.mxu0 0.0
        %289 = vmatprep.subr.mxu0 0.0
        %290 = vmatpush1.xpose.msra.mxu0 0.0
        %291 = vmatprep.subr.mxu0 0.0
        %292 = vmatpush1.xpose.msra.mxu0 0.0
        %293 = vmatprep.subr.mxu0 0.0
        %294 = vmatpush1.xpose.msra.mxu0 0.0
        %295 = vmatprep.subr.mxu0 0.0
        %296 = vmatpush1.xpose.msra.mxu0 0.0
        %297 = vmatprep.subr.mxu0 0.0
        %298 = vmatpush1.xpose.msra.mxu0 0.0
        %299 = vmatprep.subr.mxu0 0.0
        %300 = vmatpush1.xpose.msra.mxu0 0.0
        %301 = vmatprep.subr.mxu0 0.0
        %302 = vmatpush1.xpose.msra.mxu0 0.0
        %303 = vmatprep.subr.mxu0 0.0
        %304 = vmatpush1.xpose.msra.mxu0 0.0
        %305 = vmatprep.subr.mxu0 0.0
        %306 = vmatpush1.xpose.msra.mxu0 0.0
        %307 = vmatprep.subr.mxu0 0.0
        %308 = vmatpush1.xpose.msra.mxu0 0.0
        %309 = vmatprep.subr.mxu0 0.0
        %310 = vmatpush1.xpose.msra.mxu0 0.0
        %311 = vmatprep.subr.mxu0 0.0
        %312 = vmatpush1.xpose.msra.mxu0 %v139
        %313 = vmatprep.subr.mxu0 0.0
        %314 = vmatpush2.xpose.msra.mxu0 0.0
        %315 = vmatprep.subr.mxu0 0.0
        %316 = vmatpush2.xpose.msra.mxu0 0.0
        %317 = vmatprep.subr.mxu0 0.0
        %318 = vmatpush2.xpose.msra.mxu0 0.0
        %319 = vmatprep.subr.mxu0 0.0
        %320 = vmatpush2.xpose.msra.mxu0 0.0
        %321 = vmatprep.subr.mxu0 0.0
        %322 = vmatpush2.xpose.msra.mxu0 0.0
        %323 = vmatprep.subr.mxu0 0.0
        %324 = vmatpush2.xpose.msra.mxu0 0.0
        %325 = vmatprep.subr.mxu0 0.0
        %326 = vmatpush2.xpose.msra.mxu0 0.0
        %327 = vmatprep.subr.mxu0 0.0
        %328 = vmatpush2.xpose.msra.mxu0 0.0
        %329 = vmatprep.subr.mxu0 0.0
        %330 = vmatpush2.xpose.msra.mxu0 0.0
        %331 = vmatprep.subr.mxu0 0.0
        %332 = vmatpush2.xpose.msra.mxu0 0.0
        %333 = vmatprep.subr.mxu0 0.0
        %334 = vmatpush2.xpose.msra.mxu0 0.0
        %335 = vmatprep.subr.mxu0 0.0
        %336 = vmatpush2.xpose.msra.mxu0 0.0
        %337 = vmatprep.subr.mxu0 0.0
        %338 = vmatpush2.xpose.msra.mxu0 0.0
        %339 = vmatprep.subr.mxu0 0.0
        %340 = vmatpush2.xpose.msra.mxu0 0.0
        %341 = vmatprep.subr.mxu0 0.0
        %342 = vmatpush2.xpose.msra.mxu0 0.0
        %343 = vmatprep.subr.mxu0 0.0
        %344 = vmatpush2.xpose.msra.mxu0 0.0
        %345 = vmatprep.mubr.f32.mxu0 0.0
        %346 = vmatmul.mubr.f32.gmra.mxu0 %v139
        %v347 = vpop.f32.mrf.mxu0
        %v348 = vadd.f32 0.0, %v347
        %v349 = vpop.f32.mrf.mxu0
        %350 = vdwg.mxu0
        %351 = vmatprep.subr.mxu0 0.0
        %352 = vmatpush1.xpose.msra.mxu0 0.0
        %353 = vmatprep.subr.mxu0 0.0
        %354 = vmatpush1.xpose.msra.mxu0 0.0
        %355 = vmatprep.subr.mxu0 0.0
        %356 = vmatpush1.xpose.msra.mxu0 0.0
        %357 = vmatprep.subr.mxu0 0.0
        %358 = vmatpush1.xpose.msra.mxu0 0.0
        %359 = vmatprep.subr.mxu0 0.0
        %360 = vmatpush1.xpose.msra.mxu0 0.0
        %361 = vmatprep.subr.mxu0 0.0
        %362 = vmatpush1.xpose.msra.mxu0 0.0
        %363 = vmatprep.subr.mxu0 0.0
        %364 = vmatpush1.xpose.msra.mxu0 0.0
        %365 = vmatprep.subr.mxu0 0.0
        %366 = vmatpush1.xpose.msra.mxu0 0.0
        %367 = vmatprep.subr.mxu0 0.0
        %368 = vmatpush1.xpose.msra.mxu0 0.0
        %369 = vmatprep.subr.mxu0 0.0
        %370 = vmatpush1.xpose.msra.mxu0 0.0
        %371 = vmatprep.subr.mxu0 0.0
        %372 = vmatpush1.xpose.msra.mxu0 0.0
        %373 = vmatprep.subr.mxu0 0.0
        %374 = vmatpush1.xpose.msra.mxu0 0.0
        %375 = vmatprep.subr.mxu0 0.0
        %376 = vmatpush1.xpose.msra.mxu0 0.0
        %377 = vmatprep.subr.mxu0 0.0
        %378 = vmatpush1.xpose.msra.mxu0 0.0
        %379 = vmatprep.subr.mxu0 0.0
        %380 = vmatpush1.xpose.msra.mxu0 0.0
        %381 = vmatprep.subr.mxu0 0.0
        %382 = vmatpush1.xpose.msra.mxu0 %v140
        %383 = vmatprep.subr.mxu0 0.0
        %384 = vmatpush2.xpose.msra.mxu0 0.0
        %385 = vmatprep.subr.mxu0 0.0
        %386 = vmatpush2.xpose.msra.mxu0 0.0
        %387 = vmatprep.subr.mxu0 0.0
        %388 = vmatpush2.xpose.msra.mxu0 0.0
        %389 = vmatprep.subr.mxu0 0.0
        %390 = vmatpush2.xpose.msra.mxu0 0.0
        %391 = vmatprep.subr.mxu0 0.0
        %392 = vmatpush2.xpose.msra.mxu0 0.0
        %393 = vmatprep.subr.mxu0 0.0
        %394 = vmatpush2.xpose.msra.mxu0 0.0
        %395 = vmatprep.subr.mxu0 0.0
        %396 = vmatpush2.xpose.msra.mxu0 0.0
        %397 = vmatprep.subr.mxu0 0.0
        %398 = vmatpush2.xpose.msra.mxu0 0.0
        %399 = vmatprep.subr.mxu0 0.0
        %400 = vmatpush2.xpose.msra.mxu0 0.0
        %401 = vmatprep.subr.mxu0 0.0
        %402 = vmatpush2.xpose.msra.mxu0 0.0
        %403 = vmatprep.subr.mxu0 0.0
        %404 = vmatpush2.xpose.msra.mxu0 0.0
        %405 = vmatprep.subr.mxu0 0.0
        %406 = vmatpush2.xpose.msra.mxu0 0.0
        %407 = vmatprep.subr.mxu0 0.0
        %408 = vmatpush2.xpose.msra.mxu0 0.0
        %409 = vmatprep.subr.mxu0 0.0
        %410 = vmatpush2.xpose.msra.mxu0 0.0
        %411 = vmatprep.subr.mxu0 0.0
        %412 = vmatpush2.xpose.msra.mxu0 0.0
        %413 = vmatprep.subr.mxu0 0.0
        %414 = vmatpush2.xpose.msra.mxu0 0.0
        %415 = vmatprep.mubr.f32.mxu0 0.0
        %416 = vmatmul.mubr.f32.gmra.mxu0 %v140
        %v417 = vpop.f32.mrf.mxu0
        %v418 = vadd.f32 0.0, %v417
        %v419 = vpop.f32.mrf.mxu0
        %420 = vdwg.mxu0
        %421 = vadd.xlane.f32.xlu0 %v137
        %v422 = vpop.xlane.xlu0 %421
        %423 = vadd.xlane.f32.xlu0 %v138
        %v424 = vpop.xlane.xlu0 %423
        %425 = vadd.xlane.f32.xlu0 %v139
        %v426 = vpop.xlane.xlu0 %425
        %427 = vadd.xlane.f32.xlu0 %v140
        %v428 = vpop.xlane.xlu0 %427
        %v429 = vmul.f32 %v422, 0.0078125
        %v430 = vmul.f32 %v424, 0.0078125
        %v431 = vmul.f32 %v426, 0.0078125
        %v432 = vmul.f32 %v428, 0.0078125
        %vm433 = vcmask 7168
        %v435 = vsel %vm433, %v429, 0
        %437 = vmatprep.subr.mxu0 0.0
        %438 = vmatpush1.xpose.msra.mxu0 0.0
        %439 = vmatprep.subr.mxu0 0.0
        %440 = vmatpush1.xpose.msra.mxu0 0.0
        %441 = vmatprep.subr.mxu0 0.0
        %442 = vmatpush1.xpose.msra.mxu0 0.0
        %443 = vmatprep.subr.mxu0 0.0
        %444 = vmatpush1.xpose.msra.mxu0 0.0
        %445 = vmatprep.subr.mxu0 0.0
        %446 = vmatpush1.xpose.msra.mxu0 0.0
        %447 = vmatprep.subr.mxu0 0.0
        %448 = vmatpush1.xpose.msra.mxu0 0.0
        %449 = vmatprep.subr.mxu0 0.0
        %450 = vmatpush1.xpose.msra.mxu0 0.0
        %451 = vmatprep.subr.mxu0 0.0
        %452 = vmatpush1.xpose.msra.mxu0 0.0
        %453 = vmatprep.subr.mxu0 0.0
        %454 = vmatpush1.xpose.msra.mxu0 0.0
        %455 = vmatprep.subr.mxu0 0.0
        %456 = vmatpush1.xpose.msra.mxu0 0.0
        %457 = vmatprep.subr.mxu0 0.0
        %458 = vmatpush1.xpose.msra.mxu0 0.0
        %459 = vmatprep.subr.mxu0 0.0
        %460 = vmatpush1.xpose.msra.mxu0 0.0
        %461 = vmatprep.subr.mxu0 0.0
        %462 = vmatpush1.xpose.msra.mxu0 0.0
        %463 = vmatprep.subr.mxu0 0.0
        %464 = vmatpush1.xpose.msra.mxu0 0.0
        %465 = vmatprep.subr.mxu0 0.0
        %466 = vmatpush1.xpose.msra.mxu0 0.0
        %467 = vmatprep.subr.mxu0 0.0
        %468 = vmatpush1.xpose.msra.mxu0 %v435
        %469 = vmatprep.subr.mxu0 0.0
        %470 = vmatpush2.xpose.msra.mxu0 0.0
        %471 = vmatprep.subr.mxu0 0.0
        %472 = vmatpush2.xpose.msra.mxu0 0.0
        %473 = vmatprep.subr.mxu0 0.0
        %474 = vmatpush2.xpose.msra.mxu0 0.0
        %475 = vmatprep.subr.mxu0 0.0
        %476 = vmatpush2.xpose.msra.mxu0 0.0
        %477 = vmatprep.subr.mxu0 0.0
        %478 = vmatpush2.xpose.msra.mxu0 0.0
        %479 = vmatprep.subr.mxu0 0.0
        %480 = vmatpush2.xpose.msra.mxu0 0.0
        %481 = vmatprep.subr.mxu0 0.0
        %482 = vmatpush2.xpose.msra.mxu0 0.0
        %483 = vmatprep.subr.mxu0 0.0
        %484 = vmatpush2.xpose.msra.mxu0 0.0
        %485 = vmatprep.subr.mxu0 0.0
        %486 = vmatpush2.xpose.msra.mxu0 0.0
        %487 = vmatprep.subr.mxu0 0.0
        %488 = vmatpush2.xpose.msra.mxu0 0.0
        %489 = vmatprep.subr.mxu0 0.0
        %490 = vmatpush2.xpose.msra.mxu0 0.0
        %491 = vmatprep.subr.mxu0 0.0
        %492 = vmatpush2.xpose.msra.mxu0 0.0
        %493 = vmatprep.subr.mxu0 0.0
        %494 = vmatpush2.xpose.msra.mxu0 0.0
        %495 = vmatprep.subr.mxu0 0.0
        %496 = vmatpush2.xpose.msra.mxu0 0.0
        %497 = vmatprep.subr.mxu0 0.0
        %498 = vmatpush2.xpose.msra.mxu0 0.0
        %499 = vmatprep.subr.mxu0 0.0
        %500 = vmatpush2.xpose.msra.mxu0 0.0
        %501 = vmatprep.mubr.f32.mxu0 0.0
        %502 = vmatmul.mubr.f32.gmra.mxu0 %v435
        %v503 = vpop.f32.mrf.mxu0
        %v504 = vadd.f32 0.0, %v503
        %v505 = vpop.f32.mrf.mxu0
        %506 = vdwg.mxu0
        %v508 = vsel %vm433, %v430, 0
        %510 = vmatprep.subr.mxu0 0.0
        %511 = vmatpush1.xpose.msra.mxu0 0.0
        %512 = vmatprep.subr.mxu0 0.0
        %513 = vmatpush1.xpose.msra.mxu0 0.0
        %514 = vmatprep.subr.mxu0 0.0
        %515 = vmatpush1.xpose.msra.mxu0 0.0
        %516 = vmatprep.subr.mxu0 0.0
        %517 = vmatpush1.xpose.msra.mxu0 0.0
        %518 = vmatprep.subr.mxu0 0.0
        %519 = vmatpush1.xpose.msra.mxu0 0.0
        %520 = vmatprep.subr.mxu0 0.0
        %521 = vmatpush1.xpose.msra.mxu0 0.0
        %522 = vmatprep.subr.mxu0 0.0
        %523 = vmatpush1.xpose.msra.mxu0 0.0
        %524 = vmatprep.subr.mxu0 0.0
        %525 = vmatpush1.xpose.msra.mxu0 0.0
        %526 = vmatprep.subr.mxu0 0.0
        %527 = vmatpush1.xpose.msra.mxu0 0.0
        %528 = vmatprep.subr.mxu0 0.0
        %529 = vmatpush1.xpose.msra.mxu0 0.0
        %530 = vmatprep.subr.mxu0 0.0
        %531 = vmatpush1.xpose.msra.mxu0 0.0
        %532 = vmatprep.subr.mxu0 0.0
        %533 = vmatpush1.xpose.msra.mxu0 0.0
        %534 = vmatprep.subr.mxu0 0.0
        %535 = vmatpush1.xpose.msra.mxu0 0.0
        %536 = vmatprep.subr.mxu0 0.0
        %537 = vmatpush1.xpose.msra.mxu0 0.0
        %538 = vmatprep.subr.mxu0 0.0
        %539 = vmatpush1.xpose.msra.mxu0 0.0
        %540 = vmatprep.subr.mxu0 0.0
        %541 = vmatpush1.xpose.msra.mxu0 %v508
        %542 = vmatprep.subr.mxu0 0.0
        %543 = vmatpush2.xpose.msra.mxu0 0.0
        %544 = vmatprep.subr.mxu0 0.0
        %545 = vmatpush2.xpose.msra.mxu0 0.0
        %546 = vmatprep.subr.mxu0 0.0
        %547 = vmatpush2.xpose.msra.mxu0 0.0
        %548 = vmatprep.subr.mxu0 0.0
        %549 = vmatpush2.xpose.msra.mxu0 0.0
        %550 = vmatprep.subr.mxu0 0.0
        %551 = vmatpush2.xpose.msra.mxu0 0.0
        %552 = vmatprep.subr.mxu0 0.0
        %553 = vmatpush2.xpose.msra.mxu0 0.0
        %554 = vmatprep.subr.mxu0 0.0
        %555 = vmatpush2.xpose.msra.mxu0 0.0
        %556 = vmatprep.subr.mxu0 0.0
        %557 = vmatpush2.xpose.msra.mxu0 0.0
        %558 = vmatprep.subr.mxu0 0.0
        %559 = vmatpush2.xpose.msra.mxu0 0.0
        %560 = vmatprep.subr.mxu0 0.0
        %561 = vmatpush2.xpose.msra.mxu0 0.0
        %562 = vmatprep.subr.mxu0 0.0
        %563 = vmatpush2.xpose.msra.mxu0 0.0
        %564 = vmatprep.subr.mxu0 0.0
        %565 = vmatpush2.xpose.msra.mxu0 0.0
        %566 = vmatprep.subr.mxu0 0.0
        %567 = vmatpush2.xpose.msra.mxu0 0.0
        %568 = vmatprep.subr.mxu0 0.0
        %569 = vmatpush2.xpose.msra.mxu0 0.0
        %570 = vmatprep.subr.mxu0 0.0
        %571 = vmatpush2.xpose.msra.mxu0 0.0
        %572 = vmatprep.subr.mxu0 0.0
        %573 = vmatpush2.xpose.msra.mxu0 0.0
        %574 = vmatprep.mubr.f32.mxu0 0.0
        %575 = vmatmul.mubr.f32.gmra.mxu0 %v508
        %v576 = vpop.f32.mrf.mxu0
        %v577 = vadd.f32 0.0, %v576
        %v578 = vpop.f32.mrf.mxu0
        %579 = vdwg.mxu0
        %v581 = vsel %vm433, %v431, 0
        %583 = vmatprep.subr.mxu0 0.0
        %584 = vmatpush1.xpose.msra.mxu0 0.0
        %585 = vmatprep.subr.mxu0 0.0
        %586 = vmatpush1.xpose.msra.mxu0 0.0
        %587 = vmatprep.subr.mxu0 0.0
        %588 = vmatpush1.xpose.msra.mxu0 0.0
        %589 = vmatprep.subr.mxu0 0.0
        %590 = vmatpush1.xpose.msra.mxu0 0.0
        %591 = vmatprep.subr.mxu0 0.0
        %592 = vmatpush1.xpose.msra.mxu0 0.0
        %593 = vmatprep.subr.mxu0 0.0
        %594 = vmatpush1.xpose.msra.mxu0 0.0
        %595 = vmatprep.subr.mxu0 0.0
        %596 = vmatpush1.xpose.msra.mxu0 0.0
        %597 = vmatprep.subr.mxu0 0.0
        %598 = vmatpush1.xpose.msra.mxu0 0.0
        %599 = vmatprep.subr.mxu0 0.0
        %600 = vmatpush1.xpose.msra.mxu0 0.0
        %601 = vmatprep.subr.mxu0 0.0
        %602 = vmatpush1.xpose.msra.mxu0 0.0
        %603 = vmatprep.subr.mxu0 0.0
        %604 = vmatpush1.xpose.msra.mxu0 0.0
        %605 = vmatprep.subr.mxu0 0.0
        %606 = vmatpush1.xpose.msra.mxu0 0.0
        %607 = vmatprep.subr.mxu0 0.0
        %608 = vmatpush1.xpose.msra.mxu0 0.0
        %609 = vmatprep.subr.mxu0 0.0
        %610 = vmatpush1.xpose.msra.mxu0 0.0
        %611 = vmatprep.subr.mxu0 0.0
        %612 = vmatpush1.xpose.msra.mxu0 0.0
        %613 = vmatprep.subr.mxu0 0.0
        %614 = vmatpush1.xpose.msra.mxu0 %v581
        %615 = vmatprep.subr.mxu0 0.0
        %616 = vmatpush2.xpose.msra.mxu0 0.0
        %617 = vmatprep.subr.mxu0 0.0
        %618 = vmatpush2.xpose.msra.mxu0 0.0
        %619 = vmatprep.subr.mxu0 0.0
        %620 = vmatpush2.xpose.msra.mxu0 0.0
        %621 = vmatprep.subr.mxu0 0.0
        %622 = vmatpush2.xpose.msra.mxu0 0.0
        %623 = vmatprep.subr.mxu0 0.0
        %624 = vmatpush2.xpose.msra.mxu0 0.0
        %625 = vmatprep.subr.mxu0 0.0
        %626 = vmatpush2.xpose.msra.mxu0 0.0
        %627 = vmatprep.subr.mxu0 0.0
        %628 = vmatpush2.xpose.msra.mxu0 0.0
        %629 = vmatprep.subr.mxu0 0.0
        %630 = vmatpush2.xpose.msra.mxu0 0.0
        %631 = vmatprep.subr.mxu0 0.0
        %632 = vmatpush2.xpose.msra.mxu0 0.0
        %633 = vmatprep.subr.mxu0 0.0
        %634 = vmatpush2.xpose.msra.mxu0 0.0
        %635 = vmatprep.subr.mxu0 0.0
        %636 = vmatpush2.xpose.msra.mxu0 0.0
        %637 = vmatprep.subr.mxu0 0.0
        %638 = vmatpush2.xpose.msra.mxu0 0.0
        %639 = vmatprep.subr.mxu0 0.0
        %640 = vmatpush2.xpose.msra.mxu0 0.0
        %641 = vmatprep.subr.mxu0 0.0
        %642 = vmatpush2.xpose.msra.mxu0 0.0
        %643 = vmatprep.subr.mxu0 0.0
        %644 = vmatpush2.xpose.msra.mxu0 0.0
        %645 = vmatprep.subr.mxu0 0.0
        %646 = vmatpush2.xpose.msra.mxu0 0.0
        %647 = vmatprep.mubr.f32.mxu0 0.0
        %648 = vmatmul.mubr.f32.gmra.mxu0 %v581
        %v649 = vpop.f32.mrf.mxu0
        %v650 = vadd.f32 0.0, %v649
        %v651 = vpop.f32.mrf.mxu0
        %652 = vdwg.mxu0
        %v654 = vsel %vm433, %v432, 0
        %656 = vmatprep.subr.mxu0 0.0
        %657 = vmatpush1.xpose.msra.mxu0 0.0
        %658 = vmatprep.subr.mxu0 0.0
        %659 = vmatpush1.xpose.msra.mxu0 0.0
        %660 = vmatprep.subr.mxu0 0.0
        %661 = vmatpush1.xpose.msra.mxu0 0.0
        %662 = vmatprep.subr.mxu0 0.0
        %663 = vmatpush1.xpose.msra.mxu0 0.0
        %664 = vmatprep.subr.mxu0 0.0
        %665 = vmatpush1.xpose.msra.mxu0 0.0
        %666 = vmatprep.subr.mxu0 0.0
        %667 = vmatpush1.xpose.msra.mxu0 0.0
        %668 = vmatprep.subr.mxu0 0.0
        %669 = vmatpush1.xpose.msra.mxu0 0.0
        %670 = vmatprep.subr.mxu0 0.0
        %671 = vmatpush1.xpose.msra.mxu0 0.0
        %672 = vmatprep.subr.mxu0 0.0
        %673 = vmatpush1.xpose.msra.mxu0 0.0
        %674 = vmatprep.subr.mxu0 0.0
        %675 = vmatpush1.xpose.msra.mxu0 0.0
        %676 = vmatprep.subr.mxu0 0.0
        %677 = vmatpush1.xpose.msra.mxu0 0.0
        %678 = vmatprep.subr.mxu0 0.0
        %679 = vmatpush1.xpose.msra.mxu0 0.0
        %680 = vmatprep.subr.mxu0 0.0
        %681 = vmatpush1.xpose.msra.mxu0 0.0
        %682 = vmatprep.subr.mxu0 0.0
        %683 = vmatpush1.xpose.msra.mxu0 0.0
        %684 = vmatprep.subr.mxu0 0.0
        %685 = vmatpush1.xpose.msra.mxu0 0.0
        %686 = vmatprep.subr.mxu0 0.0
        %687 = vmatpush1.xpose.msra.mxu0 %v654
        %688 = vmatprep.subr.mxu0 0.0
        %689 = vmatpush2.xpose.msra.mxu0 0.0
        %690 = vmatprep.subr.mxu0 0.0
        %691 = vmatpush2.xpose.msra.mxu0 0.0
        %692 = vmatprep.subr.mxu0 0.0
        %693 = vmatpush2.xpose.msra.mxu0 0.0
        %694 = vmatprep.subr.mxu0 0.0
        %695 = vmatpush2.xpose.msra.mxu0 0.0
        %696 = vmatprep.subr.mxu0 0.0
        %697 = vmatpush2.xpose.msra.mxu0 0.0
        %698 = vmatprep.subr.mxu0 0.0
        %699 = vmatpush2.xpose.msra.mxu0 0.0
        %700 = vmatprep.subr.mxu0 0.0
        %701 = vmatpush2.xpose.msra.mxu0 0.0
        %702 = vmatprep.subr.mxu0 0.0
        %703 = vmatpush2.xpose.msra.mxu0 0.0
        %704 = vmatprep.subr.mxu0 0.0
        %705 = vmatpush2.xpose.msra.mxu0 0.0
        %706 = vmatprep.subr.mxu0 0.0
        %707 = vmatpush2.xpose.msra.mxu0 0.0
        %708 = vmatprep.subr.mxu0 0.0
        %709 = vmatpush2.xpose.msra.mxu0 0.0
        %710 = vmatprep.subr.mxu0 0.0
        %711 = vmatpush2.xpose.msra.mxu0 0.0
        %712 = vmatprep.subr.mxu0 0.0
        %713 = vmatpush2.xpose.msra.mxu0 0.0
        %714 = vmatprep.subr.mxu0 0.0
        %715 = vmatpush2.xpose.msra.mxu0 0.0
        %716 = vmatprep.subr.mxu0 0.0
        %717 = vmatpush2.xpose.msra.mxu0 0.0
        %718 = vmatprep.subr.mxu0 0.0
        %719 = vmatpush2.xpose.msra.mxu0 0.0
        %720 = vmatprep.mubr.f32.mxu0 0.0
        %721 = vmatmul.mubr.f32.gmra.mxu0 %v654
        %v722 = vpop.f32.mrf.mxu0
        %v723 = vadd.f32 0.0, %v722
        %v724 = vpop.f32.mrf.mxu0
        %725 = vdwg.mxu0
        %v726 = vmul.f32 %v504, 128.0
        %v727 = vmul.f32 %v577, 128.0
        %v728 = vmul.f32 %v650, 128.0
        %v729 = vmul.f32 %v723, 128.0
        %v730 = vsub.f32 %v208, %v726
        %v731 = vsub.f32 %v278, %v727
        %v732 = vsub.f32 %v348, %v728
        %v733 = vsub.f32 %v418, %v729
        %v734 = vmul.f32 %v730, 0.0078125
        %v735 = vmul.f32 %v731, 0.0078125
        %v736 = vmul.f32 %v732, 0.0078125
        %v737 = vmul.f32 %v733, 0.0078125
        %vm738 = vcmask 64512
        %739 = vst.msk [vmem:[%s134] sm:$0xff] %vm738, %v734
        %740 = vst.msk [vmem:[%s134 + $0x8] sm:$0xff] %vm738, %v735
        %741 = vst.msk [vmem:[%s134 + $0x10] sm:$0xff] %vm738, %v736
        %742 = vst.msk [vmem:[%s134 + $0x18] sm:$0xff] %vm738, %v737
        %s743 = sand.u32 %s52, 1
        %s744 = scalar_lea.sflag [#allocation4], %s743
        %s745 = sand.u32 %s52, 1
        %s746 = smul.addr %s745, 32
        %s747 = scalar_lea.vmem [#allocation5], %s746
        // Predicated region
        $region29: #{tpu_custom_call.1} parent=23 // pred_check
          %p748 = pneg %p62
        $region30: #{tpu_custom_call.1} parent=23 // pred_check_branch
          %750 = sbr.rel (%p748) target = $region32
        $region31: #{tpu_custom_call.1} parent=23 // pred_region
          %s751 = smul.u32 4, %s18
          %s753 = ssub.s32 512, 512
          %754 = vsyncadd %s744, %s753
          %s755 = smul.addr %s751, 128
          %s756 = scalar_lea.hbm %s1, %s755
          %s757 = sshll.u32 %s747, 4
          %s758 = int_to_ptr.vmem [resolvable:$true] %s757
          %763 = dma.vmem_to_hbm [thread:$0]  %s758, 512, %s756, %s744, 128, 128, 8
        $region32: #{tpu_custom_call.1} parent=23 // pred_fallthru
          _
      $region24: #{tpu_custom_call.1} parent=5 // pred_fallthru
        _
      %p764 = scmp.le.s32.totalorder 2, %s13
      // Predicated region
      $region33: #{tpu_custom_call.1} parent=5 // pred_check
        %p765 = pneg %p764
      $region34: #{tpu_custom_call.1} parent=5 // pred_check_branch
        %767 = sbr.rel (%p765) target = $region36
      $region35: #{tpu_custom_call.1} parent=5 // pred_region
        %s768 = ssub.s32 %s13, 2
        // Predicated region
        $region37: #{tpu_custom_call.1} parent=35 // pred_check
          %p769 = pneg %p68
        $region38: #{tpu_custom_call.1} parent=35 // pred_check_branch
          %771 = sbr.rel (%p769) target = $region40
        $region39: #{tpu_custom_call.1} parent=35 // pred_region
          %s772 = sand.u32 %s53, 1
          %s773 = scalar_lea.sflag [#allocation4], %s772
          %s774 = sand.u32 %s53, 1
          %s775 = smul.addr %s774, 32
          %s776 = scalar_lea.vmem [#allocation5], %s775
          %777 = dma.done %s773, 512
        $region40: #{tpu_custom_call.1} parent=35 // pred_fallthru
          _
      $region36: #{tpu_custom_call.1} parent=5 // pred_fallthru
        _
    $region6: #{tpu_custom_call.1} parent=1 // loop_footer
      %s17 = sadd.s32 1, %s13
    $region7: #{tpu_custom_call.1} parent=1 // loop_footer_branch
      %12 = sbr.rel target = $region3
    $region8: #{tpu_custom_call.1} parent=1 // loop_exit
      _
    %778 = vsyncpa [#allocation3], 1
    %s779 = scalar_lea.sflag [#allocation3], 1
    %780 = vsyncpa %s779, 1
    %781 = vsyncpa [#allocation4], 1
    %s782 = scalar_lea.sflag [#allocation4], 1
    %783 = vsyncpa %s782, 1

</llo_original>
